<compile_context>
chip_gen: v5e
topology: v5e:2x2
jax: 0.10.0
libtpu: 0.0.40
codegen_flags: <defaults>
</compile_context>

<pallas_src>
import math
import functools

import jax
import jax.numpy as jnp
from jax import lax
from jax.experimental import pallas as pl
from jax.experimental.pallas import tpu as pltpu


def _round_up(x, m):
    return (x + m - 1) // m * m


def _vmem_capacity_bytes():
    """Physical VMEM per core; conservative (v7x) fallback if the query fails."""
    try:
        info = pltpu.get_tpu_info()
        cap = getattr(info, "vmem_capacity_bytes", None)
        if cap:
            return int(cap)
    except Exception:
        pass
    return 64 * 1024 * 1024


def _pick_q_block(S, vmem_cap):
    """Largest lane-dense (multiple-of-128) q tile that divides S.

    v7x (64 MiB VMEM/TC) and very long sequences -> 128 rows;
    v5e/v6e (128 MiB VMEM) -> 256 rows (bigger MXU M, fewer grid steps).
    """
    target = 256 if (vmem_cap >= 100 * 1024 * 1024 and S < 4096) else 128
    if S <= target:
        return S
    qb = target
    while qb >= 128:
        if S % qb == 0:
            return qb
        qb -= 128
    # TODO(synk): sequences that are not a multiple of 128 fall back to a single
    # full-length q block; pad S upstream for very long ragged sequences.
    return S


def _attn_core_kernel(bias_ref, q_ref, u_ref, vb_ref, kt_ref, vt_ref, pt_ref,
                      out_ref, *, causal, num_q_blocks, approx_recip):
    """Rel-pos attention core for one (batch, head, q-block) grid point.

    bias_ref: (1, 1, S)        f32 additive key-padding bias (0 / -1e30)
    q_ref:    (1, 1, Sq, C)    queries for this q-block, pre-scaled by 1/sqrt(C)
    u_ref:    (1, 1, C)        scaled content bias u for this head
    vb_ref:   (1, 1, C)        scaled positional bias v for this head
    kt_ref:   (1, 1, C, S)     keys, transposed (lane-dense)
    vt_ref:   (1, 1, C, S)     values, transposed (lane-dense)
    pt_ref:   (1, 1, C, Npad)  projected positional table, circularly ordered
    out_ref:  (1, 1, C, Sq)    context for this q-block, transposed (lane-dense)
    """
    qb = pl.program_id(2)

    q = q_ref[0, 0]            # [Sq, C]
    u = u_ref[0]               # [1,  C]
    vb = vb_ref[0]             # [1,  C]
    k_t = kt_ref[0, 0]         # [C,  S]
    v_t = vt_ref[0, 0]         # [C,  S]
    p_t = pt_ref[0, 0]         # [C,  Npad]
    f32 = jnp.float32

    Sq = q.shape[0]
    S = k_t.shape[1]

    # (q+u), (q+v): tiny [Sq, C] VPU adds; q itself is DMA'd only once.
    q_u = q + u
    q_v = q + vb

    # content term: (q+u) K^T -> [Sq, S]   (standard MXU shape, lane-dense rhs)
    ac = lax.dot_general(q_u, k_t, (((1,), (0,)), ((), ())),
                         preferred_element_type=f32)
    # positional term (pre-shift): (q+v) P^T -> [Sq, Npad]
    bd_full = lax.dot_general(q_v, p_t, (((1,), (0,)), ((), ())),
                              preferred_element_type=f32)

    # Transformer-XL rel_shift: bd[r, j] = (q+v)[r] . p[(S-1) + j - i] with
    # i = qb*Sq + r.  The wrapper laid the positional axis out circularly, so
    # the shift is one strided XLU roll (per-row shift = absolute query index).
    base = 0 if num_q_blocks == 1 else qb * Sq
    bd = pltpu.roll(bd_full, base, 1, stride=1, stride_axis=0)[:, :S]

    # key-padding mask as a single precomputed additive bias; masked scores
    # (-1e30) underflow to exactly 0 after exp.
    scores = ac + bd + bias_ref[0]
    if causal:
        row = base + lax.broadcasted_iota(jnp.int32, (Sq, S), 0)
        col = lax.broadcasted_iota(jnp.int32, (Sq, S), 1)
        scores = jnp.where(col > row, jnp.float32(-1e30), scores)

    # numerically-stable softmax over keys (f32 math).
    scores = scores - jnp.max(scores, axis=-1, keepdims=True)
    e = jnp.exp(scores)
    denom = jnp.sum(e, axis=-1, keepdims=True)
    p_attn = e * pl.reciprocal(denom, approx=approx_recip)
    # NOTE: a *fully* masked row yields uniform attention (mean of V) here; the
    # PyTorch reference yields NaN for that degenerate input.
    # TODO(synk): attention-probability dropout omitted (eval mode / p == 0).

    # context, stored transposed so the output block is lane-dense:
    #   ctx_t[c, r] = sum_s v_t[c, s] * p_attn[r, s]
    ctx_t = lax.dot_general(v_t, p_attn.astype(v_t.dtype),
                            (((1,), (1,)), ((), ())),
                            preferred_element_type=f32)           # [C, Sq]
    out_ref[0, 0] = ctx_t.astype(out_ref.dtype)


def rel_pos_mha(query, key, value, pos_emb, mask, params, *, n_head,
                causal=False, q_block=None, compute_dtype=jnp.bfloat16):
    """Forward pass of RelPositionMultiHeadedAttention (XLA wrapper + Pallas core).

    query/key/value: [B, S, D];  pos_emb: [1 or B, 2S-1, D];  mask: [B, S]
    (nonzero == key position masked).  Linear weights are [D_in, D_out]
    (PyTorch nn.Linear weight transposed).
    """
    B, S, D = query.shape
    H = n_head
    C = D // H
    (wq, bq, wk, bk, wv, bv, wpos, wout, bout, u_b, v_b) = params
    scale = 1.0 / math.sqrt(C)
    cd = compute_dtype

    # ---- dense projections + head split (full-K XLA matmuls) ----------------
    # q keeps the natural [B,H,S,C] layout (matmul lhs); K/V are pre-transposed
    # to [B,H,C,S] so the kernel's matmul rhs / output are lane-dense.
    q_h = ((query @ wq + bq) * scale).reshape(B, S, H, C).transpose(0, 2, 1, 3)
    k_t = (key @ wk + bk).reshape(B, S, H, C).transpose(0, 2, 3, 1)
    v_t = (value @ wv + bv).reshape(B, S, H, C).transpose(0, 2, 3, 1)

    # ---- positional projection (batch-invariant) -----------------------------
    Bp = pos_emb.shape[0]
    assert Bp in (1, B), "pos_emb batch must be 1 or B"
    if causal:
        # only non-positive relative distances d = j - i are ever unmasked
        p = pos_emb[:, :S, :] @ wpos                         # [Bp, S, D]
        n_pad = _round_up(S, 128)
        p_keep = jnp.concatenate(
            [p[:, S - 1:S, :],
             jnp.zeros((Bp, n_pad - S, D), p.dtype),
             p[:, :S - 1, :]], axis=1)
    else:
        p = pos_emb @ wpos                                   # [Bp, 2S-1, D]
        Np = 2 * S - 1
        n_pad = _round_up(Np, 128)
        # circular ordering: p2[d] = p[S-1+d] for d>=0, p2[n_pad - t] = p[S-1-t]
        p_keep = jnp.concatenate(
            [p[:, S - 1:, :],
             jnp.zeros((Bp, n_pad - Np, D), p.dtype),
             p[:, :S - 1, :]], axis=1)
    p2_t = p_keep.reshape(Bp, n_pad, H, C).transpose(0, 2, 3, 1)   # [Bp,H,C,n_pad]

    # ---- small per-head biases (scale folded in) and mask bias ---------------
    u_s = (u_b * scale).reshape(H, 1, C)
    v_s = (v_b * scale).reshape(H, 1, C)
    bias = jnp.where(mask != 0, jnp.float32(-1e30),
                     jnp.float32(0.0)).reshape(B, 1, S).astype(jnp.float32)

    # ---- compute-dtype cast (bf16 fast path; f32 for strict checks) ----------
    q_h, k_t, v_t, p2_t = (x.astype(cd) for x in (q_h, k_t, v_t, p2_t))
    u_s, v_s = u_s.astype(cd), v_s.astype(cd)

    # ---- per-chip tiling / VMEM policy ---------------------------------------
    vmem_cap = _vmem_capacity_bytes()
    vmem_limit = min(vmem_cap * 3 // 4, 80 * 1024 * 1024)
    if q_block is None:
        q_block = _pick_q_block(S, vmem_cap)
    assert S % q_block == 0, "q_block must divide S"
    assert q_block == S or q_block % 128 == 0, \
        "q_block must be a multiple of 128 (lane-dense output) or the full S"
    num_qb = S // q_block

    # ---- grid: P-table residency across the batch loop when pos is shared ----
    pos_shared = (Bp == 1)
    if pos_shared:
        grid = (H, B, num_qb)
        def ix(f):
            return lambda h, b, qb: f(b, h, qb)
    else:
        grid = (B, H, num_qb)
        def ix(f):
            return lambda b, h, qb: f(b, h, qb)

    kernel = functools.partial(
        _attn_core_kernel, causal=causal, num_q_blocks=num_qb,
        approx_recip=(cd == jnp.bfloat16))

    ctx_t = pl.pallas_call(
        kernel,
        out_shape=jax.ShapeDtypeStruct((B, H, C, S), cd),
        grid_spec=pltpu.PrefetchScalarGridSpec(
            num_scalar_prefetch=0,
            grid=grid,
            in_specs=[
                pl.BlockSpec((1, 1, S), ix(lambda b, h, qb: (b, 0, 0))),          # mask bias
                pl.BlockSpec((1, 1, q_block, C),
                             ix(lambda b, h, qb: (b, h, qb, 0))),                 # q (scaled)
                pl.BlockSpec((1, 1, C), ix(lambda b, h, qb: (h, 0, 0))),          # u bias
                pl.BlockSpec((1, 1, C), ix(lambda b, h, qb: (h, 0, 0))),          # v bias
                pl.BlockSpec((1, 1, C, S), ix(lambda b, h, qb: (b, h, 0, 0))),    # K^T
                pl.BlockSpec((1, 1, C, S), ix(lambda b, h, qb: (b, h, 0, 0))),    # V^T
                pl.BlockSpec((1, 1, C, n_pad),
                             ix(lambda b, h, qb:
                                ((0 if pos_shared else b), h, 0, 0))),            # P^T
            ],
            out_specs=pl.BlockSpec((1, 1, C, q_block),
                                   ix(lambda b, h, qb: (b, h, 0, qb))),
        ),
        compiler_params=pltpu.CompilerParams(
            dimension_semantics=("parallel", "parallel", "arbitrary"),
            vmem_limit_bytes=vmem_limit,
        ),
    )(bias, q_h, u_s, v_s, k_t, v_t, p2_t)

    # ---- concat heads + output projection (one full-K matmul) ---------------
    ctx = ctx_t.transpose(0, 3, 1, 2).reshape(B, S, D).astype(query.dtype)
    return ctx @ wout + bout


def reference(query, key, value, pos_emb, mask, params, *, n_head, causal=False):
    """Pure-JAX (f32) replica of the PyTorch forward, for validation."""
    B, S, D = query.shape
    H = n_head
    C = D // H
    (wq, bq, wk, bk, wv, bv, wpos, wout, bout, u_b, v_b) = params
    q = (query @ wq + bq).reshape(B, S, H, C).transpose(0, 2, 1, 3)
    k = (key @ wk + bk).reshape(B, S, H, C).transpose(0, 2, 1, 3)
    v = (value @ wv + bv).reshape(B, S, H, C).transpose(0, 2, 1, 3)
    p = (pos_emb @ wpos).reshape(pos_emb.shape[0], -1, H, C).transpose(0, 2, 1, 3)
    q_u = q + u_b[None, :, None, :]
    q_v = q + v_b[None, :, None, :]
    ac = jnp.einsum('bhsc,bhtc->bhst', q_u, k)
    if p.shape[0] == 1:
        bd_full = jnp.einsum('bhsc,hnc->bhsn', q_v, p[0])
    else:
        bd_full = jnp.einsum('bhsc,bhnc->bhsn', q_v, p)
    idx = jnp.arange(S)[None, :] - jnp.arange(S)[:, None] + (S - 1)
    idx = jnp.broadcast_to(idx[None, None], (B, H, S, S))
    bd = jnp.take_along_axis(bd_full, idx, axis=-1)
    scores = (ac + bd) / math.sqrt(C)
    keym = mask.reshape(B, S) != 0
    scores = jnp.where(keym[:, None, None, :], -jnp.inf, scores)
    if causal:
        cm = jnp.arange(S)[None, :] > jnp.arange(S)[:, None]
        scores = jnp.where(cm[None, None], -jnp.inf, scores)
    p_attn = jax.nn.softmax(scores, axis=-1)
    x = jnp.einsum('bhst,bhtc->bhsc', p_attn, v)
    x = x.transpose(0, 2, 1, 3).reshape(B, S, D)
    return x @ wout + bout


def _make_case(seed, B, S, D, H):
    C = D // H
    N = 2 * S - 1
    root = jax.random.fold_in(jax.random.PRNGKey(0), seed)
    ks = jax.random.split(root, 16)

    def init_lin(k_, shape, fan_in):
        bound = 1.0 / math.sqrt(fan_in)
        return jax.random.uniform(k_, shape, jnp.float32, -bound, bound)

    wq = init_lin(ks[0], (D, D), D)
    bq = init_lin(ks[1], (1, D), D)
    wk = init_lin(ks[2], (D, D), D)
    bk = init_lin(ks[3], (1, D), D)
    wv = init_lin(ks[4], (D, D), D)
    bv = init_lin(ks[5], (1, D), D)
    wpos = init_lin(ks[6], (D, D), D)
    wout = init_lin(ks[7], (D, D), D)
    bout = init_lin(ks[8], (1, D), D)
    xav = math.sqrt(6.0 / (H + C))                       # xavier_uniform for u, v
    u_b = jax.random.uniform(ks[9], (H, C), jnp.float32, -xav, xav)
    v_b = jax.random.uniform(ks[10], (H, C), jnp.float32, -xav, xav)
    params = (wq, bq, wk, bk, wv, bv, wpos, wout, bout, u_b, v_b)

    query = jax.random.normal(ks[11], (B, S, D), jnp.float32)
    key = jax.random.normal(ks[12], (B, S, D), jnp.float32)
    value = jax.random.normal(ks[13], (B, S, D), jnp.float32)
    pos_emb = jax.random.normal(ks[14], (1, N, D), jnp.float32)
    # mask: [B, S], batch 1 masks its last two key positions (1 == masked);
    # no row is ever fully masked (PyTorch would NaN in that degenerate case).
    mask = jnp.zeros((B, S), jnp.int32).at[1, S - 2:].set(1)
    return query, key, value, pos_emb, mask, params


if __name__ == "__main__":
    # keep the f32 XLA matmuls (wrapper + reference) exact so the strict f32
    # checks only measure the Pallas kernel.
    jax.config.update("jax_default_matmul_precision", "highest")

    def run_case(name, seed, B, S, D, H, *, causal, compute_dtype, q_block, tol):
        qy, ky, vy, pe, mk, params = _make_case(seed, B, S, D, H)
        out = rel_pos_mha(qy, ky, vy, pe, mk, params, n_head=H, causal=causal,
                          q_block=q_block, compute_dtype=compute_dtype)
        out = jax.block_until_ready(out)
        ref = reference(qy, ky, vy, pe, mk, params, n_head=H, causal=causal)
        assert out.shape == (B, S, D)
        err = float(jnp.max(jnp.abs(out.astype(jnp.float32) - ref)))
        assert err < tol, f"{name}: max abs err {err} >= {tol}"
        return err

    # A: tiny smoke test, exact-f32 compute path, single q-block (static shift).
    run_case("tiny_f32", 0, 2, 8, 32, 4, causal=False,
             compute_dtype=jnp.float32, q_block=None, tol=2e-3)
    # B: multi-q-block (dynamic rel-shift) + causal compact positional table, f32.
    run_case("causal_f32", 1, 2, 256, 64, 4, causal=True,
             compute_dtype=jnp.float32, q_block=128, tol=2e-3)
    # C: bf16 fast path (full-rate MXU matmuls), looser tolerance.
    run_case("bf16", 2, 2, 256, 64, 4, causal=False,
             compute_dtype=jnp.bfloat16, q_block=128, tol=5e-2)

    print("KERNEL_OK")
</pallas_src>

<mosaic_0001>
module attributes {stable_mosaic.version = 11 : i64} {
  func.func @_attn_core_kernel(%arg0: i32, %arg1: i32, %arg2: i32, %arg3: memref<1x1x8xf32, #tpu.memory_space<vmem>>, %arg4: memref<1x1x8x8xf32, #tpu.memory_space<vmem>>, %arg5: memref<1x1x8xf32, #tpu.memory_space<vmem>>, %arg6: memref<1x1x8xf32, #tpu.memory_space<vmem>>, %arg7: memref<1x1x8x8xf32, #tpu.memory_space<vmem>>, %arg8: memref<1x1x8x8xf32, #tpu.memory_space<vmem>>, %arg9: memref<1x1x8x128xf32, #tpu.memory_space<vmem>>, %arg10: memref<1x1x8x8xf32, #tpu.memory_space<vmem>>) attributes {dimension_semantics = [#tpu.dimension_semantics<parallel>, #tpu.dimension_semantics<parallel>, #tpu.dimension_semantics<arbitrary>], iteration_bounds = array<i64: 4, 2, 1>, scalar_prefetch = 0 : i64, scratch_operands = 0 : i64, tpu.core_type = #tpu.core_type<tc>, window_params = [{transform_indices = @transform_0, window_bounds = array<i64: 1, 1, 8>}, {transform_indices = @transform_1, window_bounds = array<i64: 1, 1, 8, 8>}, {transform_indices = @transform_2, window_bounds = array<i64: 1, 1, 8>}, {transform_indices = @transform_3, window_bounds = array<i64: 1, 1, 8>}, {transform_indices = @transform_4, window_bounds = array<i64: 1, 1, 8, 8>}, {transform_indices = @transform_5, window_bounds = array<i64: 1, 1, 8, 8>}, {transform_indices = @transform_6, window_bounds = array<i64: 1, 1, 8, 128>}, {transform_indices = @transform_7, window_bounds = array<i64: 1, 1, 8, 8>}]} {
    %c0 = arith.constant 0 : index
    %c0_0 = arith.constant 0 : index
    %c0_1 = arith.constant 0 : index
    %c0_2 = arith.constant 0 : index
    %0 = vector.load %arg4[%c0, %c0_0, %c0_1, %c0_2] : memref<1x1x8x8xf32, #tpu.memory_space<vmem>>, vector<1x1x8x8xf32>
    %1 = vector.shape_cast %0 : vector<1x1x8x8xf32> to vector<8x8xf32>
    %c0_3 = arith.constant 0 : index
    %c0_4 = arith.constant 0 : index
    %c0_5 = arith.constant 0 : index
    %2 = vector.load %arg5[%c0_3, %c0_4, %c0_5] : memref<1x1x8xf32, #tpu.memory_space<vmem>>, vector<1x1x8xf32>
    %3 = vector.shape_cast %2 : vector<1x1x8xf32> to vector<1x8xf32>
    %c0_6 = arith.constant 0 : index
    %c0_7 = arith.constant 0 : index
    %c0_8 = arith.constant 0 : index
    %4 = vector.load %arg6[%c0_6, %c0_7, %c0_8] : memref<1x1x8xf32, #tpu.memory_space<vmem>>, vector<1x1x8xf32>
    %5 = vector.shape_cast %4 : vector<1x1x8xf32> to vector<1x8xf32>
    %c0_9 = arith.constant 0 : index
    %c0_10 = arith.constant 0 : index
    %c0_11 = arith.constant 0 : index
    %c0_12 = arith.constant 0 : index
    %6 = vector.load %arg7[%c0_9, %c0_10, %c0_11, %c0_12] : memref<1x1x8x8xf32, #tpu.memory_space<vmem>>, vector<1x1x8x8xf32>
    %7 = vector.shape_cast %6 : vector<1x1x8x8xf32> to vector<8x8xf32>
    %c0_13 = arith.constant 0 : index
    %c0_14 = arith.constant 0 : index
    %c0_15 = arith.constant 0 : index
    %c0_16 = arith.constant 0 : index
    %8 = vector.load %arg8[%c0_13, %c0_14, %c0_15, %c0_16] : memref<1x1x8x8xf32, #tpu.memory_space<vmem>>, vector<1x1x8x8xf32>
    %9 = vector.shape_cast %8 : vector<1x1x8x8xf32> to vector<8x8xf32>
    %c0_17 = arith.constant 0 : index
    %c0_18 = arith.constant 0 : index
    %c0_19 = arith.constant 0 : index
    %c0_20 = arith.constant 0 : index
    %10 = vector.load %arg9[%c0_17, %c0_18, %c0_19, %c0_20] : memref<1x1x8x128xf32, #tpu.memory_space<vmem>>, vector<1x1x8x128xf32>
    %11 = vector.shape_cast %10 : vector<1x1x8x128xf32> to vector<8x128xf32>
    %12 = vector.broadcast %3 : vector<1x8xf32> to vector<8x8xf32>
    %13 = arith.addf %1, %12 : vector<8x8xf32>
    %14 = vector.broadcast %5 : vector<1x8xf32> to vector<8x8xf32>
    %15 = arith.addf %1, %14 : vector<8x8xf32>
    %cst = arith.constant dense<0.000000e+00> : vector<8x8xf32>
    %16 = tpu.matmul %13, %7, %cst {dimension_numbers = #tpu.dot_dimension_numbers<[1], [0], [0], [1], [0, 0, 1, 1], [], []>, precision = #tpu.contract_precision<fp32>} : vector<8x8xf32>, vector<8x8xf32>, vector<8x8xf32> -> vector<8x8xf32>
    %cst_21 = arith.constant dense<0.000000e+00> : vector<8x128xf32>
    %17 = tpu.matmul %15, %11, %cst_21 {dimension_numbers = #tpu.dot_dimension_numbers<[1], [0], [0], [1], [0, 0, 1, 1], [], []>, precision = #tpu.contract_precision<fp32>} : vector<8x8xf32>, vector<8x128xf32>, vector<8x128xf32> -> vector<8x128xf32>
    %c0_i32 = arith.constant 0 : i32
    %18 = tpu.dynamic_rotate %17 by %c0_i32 dim 1 {stride = 1 : si32, stride_dimension = 0 : si32} : vector<8x128xf32>, i32 -> vector<8x128xf32>
    %19 = vector.extract_strided_slice %18 {offsets = [0, 0], sizes = [8, 8], strides = [1, 1]} : vector<8x128xf32> to vector<8x8xf32>
    %20 = arith.addf %16, %19 : vector<8x8xf32>
    %c0_22 = arith.constant 0 : index
    %c0_23 = arith.constant 0 : index
    %c0_24 = arith.constant 0 : index
    %21 = vector.load %arg3[%c0_22, %c0_23, %c0_24] : memref<1x1x8xf32, #tpu.memory_space<vmem>>, vector<1x1x8xf32>
    %22 = vector.shape_cast %21 : vector<1x1x8xf32> to vector<1x8xf32>
    %23 = vector.broadcast %22 : vector<1x8xf32> to vector<8x8xf32>
    %24 = arith.addf %20, %23 : vector<8x8xf32>
    %cst_25 = arith.constant dense<0xFF800000> : vector<8xf32>
    %25 = vector.multi_reduction <maximumf>, %24, %cst_25 [1] : vector<8x8xf32> to vector<8xf32>
    %26 = vector.shape_cast %25 : vector<8xf32> to vector<8x1xf32>
    %27 = vector.broadcast %26 : vector<8x1xf32> to vector<8x8xf32>
    %28 = arith.subf %24, %27 : vector<8x8xf32>
    %29 = math.exp %28 : vector<8x8xf32>
    %cst_26 = arith.constant dense<0.000000e+00> : vector<8xf32>
    %30 = vector.multi_reduction <add>, %29, %cst_26 [1] : vector<8x8xf32> to vector<8xf32>
    %31 = vector.shape_cast %30 : vector<8xf32> to vector<8x1xf32>
    %32 = tpu.reciprocal %31 : vector<8x1xf32> -> vector<8x1xf32>
    %33 = vector.broadcast %32 : vector<8x1xf32> to vector<8x8xf32>
    %34 = arith.mulf %29, %33 : vector<8x8xf32>
    %cst_27 = arith.constant dense<0.000000e+00> : vector<8x8xf32>
    %35 = tpu.matmul %9, %34, %cst_27 {dimension_numbers = #tpu.dot_dimension_numbers<[1], [1], [0], [0], [0, 0, 1, 0], [], []>, precision = #tpu.contract_precision<fp32>} : vector<8x8xf32>, vector<8x8xf32>, vector<8x8xf32> -> vector<8x8xf32>
    %c0_28 = arith.constant 0 : index
    %c0_29 = arith.constant 0 : index
    %c0_30 = arith.constant 0 : index
    %c0_31 = arith.constant 0 : index
    %36 = vector.load %arg10[%c0_28, %c0_29, %c0_30, %c0_31] : memref<1x1x8x8xf32, #tpu.memory_space<vmem>>, vector<1x1x8x8xf32>
    %37 = vector.shape_cast %36 : vector<1x1x8x8xf32> to vector<8x8xf32>
    %38 = vector.shape_cast %35 : vector<8x8xf32> to vector<1x1x8x8xf32>
    tpu.vector_store %arg10[%c0_28, %c0_29, %c0_30, %c0_31], %38 {strides = array<i32>} : memref<1x1x8x8xf32, #tpu.memory_space<vmem>>, vector<1x1x8x8xf32>,
    return
  }
  func.func @transform_0(%arg0: i32, %arg1: i32, %arg2: i32) -> (i32, i32, i32) {
    %c0_i32 = arith.constant 0 : i32
    %c0_i32_0 = arith.constant 0 : i32
    %c0_i32_1 = arith.constant 0 : i32
    return %arg1, %c0_i32, %c0_i32_0 : i32, i32, i32
  }
  func.func @transform_1(%arg0: i32, %arg1: i32, %arg2: i32) -> (i32, i32, i32, i32) {
    %c0_i32 = arith.constant 0 : i32
    %c0_i32_0 = arith.constant 0 : i32
    return %arg1, %arg0, %arg2, %c0_i32 : i32, i32, i32, i32
  }
  func.func @transform_2(%arg0: i32, %arg1: i32, %arg2: i32) -> (i32, i32, i32) {
    %c0_i32 = arith.constant 0 : i32
    %c0_i32_0 = arith.constant 0 : i32
    %c0_i32_1 = arith.constant 0 : i32
    return %arg0, %c0_i32, %c0_i32_0 : i32, i32, i32
  }
  func.func @transform_3(%arg0: i32, %arg1: i32, %arg2: i32) -> (i32, i32, i32) {
    %c0_i32 = arith.constant 0 : i32
    %c0_i32_0 = arith.constant 0 : i32
    %c0_i32_1 = arith.constant 0 : i32
    return %arg0, %c0_i32, %c0_i32_0 : i32, i32, i32
  }
  func.func @transform_4(%arg0: i32, %arg1: i32, %arg2: i32) -> (i32, i32, i32, i32) {
    %c0_i32 = arith.constant 0 : i32
    %c0_i32_0 = arith.constant 0 : i32
    %c0_i32_1 = arith.constant 0 : i32
    return %arg1, %arg0, %c0_i32, %c0_i32_0 : i32, i32, i32, i32
  }
  func.func @transform_5(%arg0: i32, %arg1: i32, %arg2: i32) -> (i32, i32, i32, i32) {
    %c0_i32 = arith.constant 0 : i32
    %c0_i32_0 = arith.constant 0 : i32
    %c0_i32_1 = arith.constant 0 : i32
    return %arg1, %arg0, %c0_i32, %c0_i32_0 : i32, i32, i32, i32
  }
  func.func @transform_6(%arg0: i32, %arg1: i32, %arg2: i32) -> (i32, i32, i32, i32) {
    %c0_i32 = arith.constant 0 : i32
    %c0_i32_0 = arith.constant 0 : i32
    %c0_i32_1 = arith.constant 0 : i32
    %c0_i32_2 = arith.constant 0 : i32
    return %c0_i32, %arg0, %c0_i32_0, %c0_i32_1 : i32, i32, i32, i32
  }
  func.func @transform_7(%arg0: i32, %arg1: i32, %arg2: i32) -> (i32, i32, i32, i32) {
    %c0_i32 = arith.constant 0 : i32
    %c0_i32_0 = arith.constant 0 : i32
    return %arg1, %arg0, %c0_i32, %arg2 : i32, i32, i32, i32
  }
}

</mosaic_0001>

<llo_original>
// kernel: tpu_custom_call.1
$region0: #{tpu_custom_call.1}
  #allocation0 [shape = 'u32[]', space=smem, size = 0x4, offset = 0x4, fixed_abs, tag = 'smem constant byte address 0x4 - core index']
  #allocation1 [shape = 'u32[72,128]{1,0:T(1,128)}', space=vmem, size = 0x9000, scoped, tag = 'internal scratch']
  %s0 = inlined_call_operand.hbm [shape: f32[2,1,8], index: 0, kind: input, shape index: {}]
  %s1 = inlined_call_operand.hbm [shape: f32[2,4,8,8], index: 1, kind: input, shape index: {}]
  %s2 = inlined_call_operand.hbm [shape: f32[4,1,8], index: 2, kind: input, shape index: {}]
  %s3 = inlined_call_operand.hbm [shape: f32[4,1,8], index: 3, kind: input, shape index: {}]
  %s4 = inlined_call_operand.hbm [shape: f32[2,4,8,8], index: 4, kind: input, shape index: {}]
  %s5 = inlined_call_operand.hbm [shape: f32[2,4,8,8], index: 5, kind: input, shape index: {}]
  %s6 = inlined_call_operand.hbm [shape: f32[1,4,8,128], index: 6, kind: input, shape index: {}]
  %s7 = inlined_call_operand.hbm [shape: f32[2,4,8,8], index: 7, kind: output, shape index: {}]
  %s8 = sld [smem:[#allocation0]]
  $region89: #{tpu_custom_call.1} parent=0
    _
  %s10 = ssub.s32 1, %s8
  %s11 = scalar_select 0, %s10, %s8
  $region1: #{tpu_custom_call.1} parent=0
    #allocation2 [shape = 'u8[1024]{0}', space=vmem, size = 0x400, scoped, tag = 'input window, operand 0']
    #allocation3 [shape = 's32[2]{0}', space=sflag, size = 0x8, scoped, tag = 'scoped memory for tpu_custom_call.1']
    #allocation4 [shape = 's32[2]{0}', space=sflag, size = 0x8, scoped, tag = 'scoped memory for tpu_custom_call.1']
    #allocation5 [shape = 'u8[8192]{0}', space=vmem, size = 0x2000, scoped, tag = 'input window, operand 1']
    #allocation6 [shape = 's32[2]{0}', space=sflag, size = 0x8, scoped, tag = 'scoped memory for tpu_custom_call.1']
    #allocation7 [shape = 'u8[1024]{0}', space=vmem, size = 0x400, scoped, tag = 'input window, operand 2']
    #allocation8 [shape = 'u8[1024]{0}', space=vmem, size = 0x400, scoped, tag = 'input window, operand 3']
    #allocation9 [shape = 's32[2]{0}', space=sflag, size = 0x8, scoped, tag = 'scoped memory for tpu_custom_call.1']
    #allocation10 [shape = 'u8[8192]{0}', space=vmem, size = 0x2000, scoped, tag = 'input window, operand 4']
    #allocation11 [shape = 'u8[8192]{0}', space=vmem, size = 0x2000, scoped, tag = 'input window, operand 5']
    #allocation12 [shape = 's32[2]{0}', space=sflag, size = 0x8, scoped, tag = 'scoped memory for tpu_custom_call.1']
    #allocation13 [shape = 'u8[8192]{0}', space=vmem, size = 0x2000, scoped, tag = 'input window, operand 6']
    #allocation14 [shape = 'u8[8192]{0}', space=vmem, size = 0x2000, scoped, tag = 'output window, operand 0']
    %12 = vsyncpa [#allocation3], 0
    %s13 = scalar_lea.sflag [#allocation3], 1
    %14 = vsyncpa %s13, 0
    %15 = vsyncpa [#allocation6], 0
    %s16 = scalar_lea.sflag [#allocation6], 1
    %17 = vsyncpa %s16, 0
    %18 = vsyncpa [#allocation9], 0
    %s19 = scalar_lea.sflag [#allocation9], 1
    %20 = vsyncpa %s19, 0
    %21 = vsyncpa [#allocation12], 0
    %s22 = scalar_lea.sflag [#allocation12], 1
    %23 = vsyncpa %s22, 0
    %24 = vsyncpa [#allocation4], 0
    %s25 = scalar_lea.sflag [#allocation4], 1
    %26 = vsyncpa %s25, 0
    loop: start=0, step=1, limit=10
    $region2: #{tpu_custom_call.1} parent=1 // loop_pre_header
      _
    $region3: #{tpu_custom_call.1} parent=1 // loop_header
      %s28 = sphi 0, %s32
      %p29 = scmp.ge.s32.totalorder %s28, 10
      %s35 = sphi 0, %s54
      %s36 = sphi 0, %s50
      %s37 = sphi 0, %s46
      %s38 = sphi 0, %s35
      %s39 = sphi 0, %s36
      %s40 = sphi 0, %s37
      %s41 = sphi 0, %s38
      %s42 = sphi 0, %s39
      %s43 = sphi 0, %s40
      %s57 = sphi 0, %s59
      %s60 = sphi 0, %s57
      %s61 = sphi 0, %s60
      %s77 = sphi 0, %s61
      %s87 = sphi 0, %s89
      %s90 = sphi 0, %s87
      %s91 = sphi 0, %s90
      %s107 = sphi 0, %s91
      %s113 = sphi 0, %s115
      %s116 = sphi 0, %s113
      %s117 = sphi 0, %s116
      %s133 = sphi 0, %s117
      %s139 = sphi 0, %s141
      %s142 = sphi 0, %s139
      %s143 = sphi 0, %s142
      %s159 = sphi 0, %s143
      %s167 = sphi 0, %s169
      %s170 = sphi 0, %s167
      %s171 = sphi 0, %s170
      %s187 = sphi 0, %s171
      %s195 = sphi 0, %s197
      %s198 = sphi 0, %s195
      %s199 = sphi 0, %s198
      %s215 = sphi 0, %s199
      %s221 = sphi 0, %s223
      %s224 = sphi 0, %s221
      %s225 = sphi 0, %s224
      %s241 = sphi 0, %s225
      %s251 = sphi 0, %s253
      %s254 = sphi 0, %s251
      %s255 = sphi 0, %s254
      %s271 = sphi 0, %s255
    $region4: #{tpu_custom_call.1} parent=1 // loop_header_branch
      %31 = sbr.rel (%p29) target = $region8
    $region5: #{tpu_custom_call.1} parent=1 // loop_body
      %s33 = ssub.s32 %s28, 1
      %s34 = ssub.s32 %s28, 2
      %s44 = sadd.s32 1, %s37
      %p45 = scmp.ge.s32.totalorder %s44, 1
      %s46 = scalar_select %p45, 0, %s44
      %s47 = sadd.s32 1, %s36
      %s48 = scalar_select %p45, %s47, %s36
      %p49 = scmp.ge.s32.totalorder %s48, 2
      %s50 = scalar_select %p49, 0, %s48
      %s51 = sadd.s32 1, %s35
      %s52 = scalar_select %p49, %s51, %s35
      %p53 = scmp.ge.s32.totalorder %s52, 4
      %s54 = scalar_select %p53, 0, %s52
      %s55 = ssub.s32 %s36, %s50
      %p56 = scmp.eq.s32.totalorder %s55, 0
      %s58 = sadd.s32 %s57, 1
      %s59 = scalar_select %p56, %s57, %s58
      %p62 = pneg %p56
      %p63 = scmp.eq.s32.totalorder %s28, 7
      %p64 = por %p62, %p63
      %p65 = scmp.ne.s32.totalorder %s57, %s60
      %p66 = scmp.eq.s32.totalorder %s28, 0
      %p67 = por %p65, %p66
      %p68 = scmp.ne.s32.totalorder %s57, %s60
      %p69 = scmp.eq.s32.totalorder %s33, 7
      %p70 = por %p68, %p69
      %p71 = scmp.ne.s32.totalorder %s60, %s61
      %p72 = scmp.eq.s32.totalorder %s33, 0
      %p73 = por %p71, %p72
      %p74 = scmp.ne.s32.totalorder %s60, %s61
      %p75 = scmp.eq.s32.totalorder %s34, 7
      %p76 = por %p74, %p75
      %p78 = scmp.ne.s32.totalorder %s61, %s77
      %p79 = scmp.eq.s32.totalorder %s34, 0
      %p80 = por %p78, %p79
      %s81 = ssub.s32 %s36, %s50
      %s82 = ssub.s32 %s35, %s54
      %s83 = sor.u32 %s81, %s82
      %s84 = ssub.s32 %s37, %s46
      %s85 = sor.u32 %s83, %s84
      %p86 = scmp.eq.s32.totalorder %s85, 0
      %s88 = sadd.s32 %s87, 1
      %s89 = scalar_select %p86, %s87, %s88
      %p92 = pneg %p86
      %p93 = scmp.eq.s32.totalorder %s28, 7
      %p94 = por %p92, %p93
      %p95 = scmp.ne.s32.totalorder %s87, %s90
      %p96 = scmp.eq.s32.totalorder %s28, 0
      %p97 = por %p95, %p96
      %p98 = scmp.ne.s32.totalorder %s87, %s90
      %p99 = scmp.eq.s32.totalorder %s33, 7
      %p100 = por %p98, %p99
      %p101 = scmp.ne.s32.totalorder %s90, %s91
      %p102 = scmp.eq.s32.totalorder %s33, 0
      %p103 = por %p101, %p102
      %p104 = scmp.ne.s32.totalorder %s90, %s91
      %p105 = scmp.eq.s32.totalorder %s34, 7
      %p106 = por %p104, %p105
      %p108 = scmp.ne.s32.totalorder %s91, %s107
      %p109 = scmp.eq.s32.totalorder %s34, 0
      %p110 = por %p108, %p109
      %s111 = ssub.s32 %s35, %s54
      %p112 = scmp.eq.s32.totalorder %s111, 0
      %s114 = sadd.s32 %s113, 1
      %s115 = scalar_select %p112, %s113, %s114
      %p118 = pneg %p112
      %p119 = scmp.eq.s32.totalorder %s28, 7
      %p120 = por %p118, %p119
      %p121 = scmp.ne.s32.totalorder %s113, %s116
      %p122 = scmp.eq.s32.totalorder %s28, 0
      %p123 = por %p121, %p122
      %p124 = scmp.ne.s32.totalorder %s113, %s116
      %p125 = scmp.eq.s32.totalorder %s33, 7
      %p126 = por %p124, %p125
      %p127 = scmp.ne.s32.totalorder %s116, %s117
      %p128 = scmp.eq.s32.totalorder %s33, 0
      %p129 = por %p127, %p128
      %p130 = scmp.ne.s32.totalorder %s116, %s117
      %p131 = scmp.eq.s32.totalorder %s34, 7
      %p132 = por %p130, %p131
      %p134 = scmp.ne.s32.totalorder %s117, %s133
      %p135 = scmp.eq.s32.totalorder %s34, 0
      %p136 = por %p134, %p135
      %s137 = ssub.s32 %s35, %s54
      %p138 = scmp.eq.s32.totalorder %s137, 0
      %s140 = sadd.s32 %s139, 1
      %s141 = scalar_select %p138, %s139, %s140
      %p144 = pneg %p138
      %p145 = scmp.eq.s32.totalorder %s28, 7
      %p146 = por %p144, %p145
      %p147 = scmp.ne.s32.totalorder %s139, %s142
      %p148 = scmp.eq.s32.totalorder %s28, 0
      %p149 = por %p147, %p148
      %p150 = scmp.ne.s32.totalorder %s139, %s142
      %p151 = scmp.eq.s32.totalorder %s33, 7
      %p152 = por %p150, %p151
      %p153 = scmp.ne.s32.totalorder %s142, %s143
      %p154 = scmp.eq.s32.totalorder %s33, 0
      %p155 = por %p153, %p154
      %p156 = scmp.ne.s32.totalorder %s142, %s143
      %p157 = scmp.eq.s32.totalorder %s34, 7
      %p158 = por %p156, %p157
      %p160 = scmp.ne.s32.totalorder %s143, %s159
      %p161 = scmp.eq.s32.totalorder %s34, 0
      %p162 = por %p160, %p161
      %s163 = ssub.s32 %s36, %s50
      %s164 = ssub.s32 %s35, %s54
      %s165 = sor.u32 %s163, %s164
      %p166 = scmp.eq.s32.totalorder %s165, 0
      %s168 = sadd.s32 %s167, 1
      %s169 = scalar_select %p166, %s167, %s168
      %p172 = pneg %p166
      %p173 = scmp.eq.s32.totalorder %s28, 7
      %p174 = por %p172, %p173
      %p175 = scmp.ne.s32.totalorder %s167, %s170
      %p176 = scmp.eq.s32.totalorder %s28, 0
      %p177 = por %p175, %p176
      %p178 = scmp.ne.s32.totalorder %s167, %s170
      %p179 = scmp.eq.s32.totalorder %s33, 7
      %p180 = por %p178, %p179
      %p181 = scmp.ne.s32.totalorder %s170, %s171
      %p182 = scmp.eq.s32.totalorder %s33, 0
      %p183 = por %p181, %p182
      %p184 = scmp.ne.s32.totalorder %s170, %s171
      %p185 = scmp.eq.s32.totalorder %s34, 7
      %p186 = por %p184, %p185
      %p188 = scmp.ne.s32.totalorder %s171, %s187
      %p189 = scmp.eq.s32.totalorder %s34, 0
      %p190 = por %p188, %p189
      %s191 = ssub.s32 %s36, %s50
      %s192 = ssub.s32 %s35, %s54
      %s193 = sor.u32 %s191, %s192
      %p194 = scmp.eq.s32.totalorder %s193, 0
      %s196 = sadd.s32 %s195, 1
      %s197 = scalar_select %p194, %s195, %s196
      %p200 = pneg %p194
      %p201 = scmp.eq.s32.totalorder %s28, 7
      %p202 = por %p200, %p201
      %p203 = scmp.ne.s32.totalorder %s195, %s198
      %p204 = scmp.eq.s32.totalorder %s28, 0
      %p205 = por %p203, %p204
      %p206 = scmp.ne.s32.totalorder %s195, %s198
      %p207 = scmp.eq.s32.totalorder %s33, 7
      %p208 = por %p206, %p207
      %p209 = scmp.ne.s32.totalorder %s198, %s199
      %p210 = scmp.eq.s32.totalorder %s33, 0
      %p211 = por %p209, %p210
      %p212 = scmp.ne.s32.totalorder %s198, %s199
      %p213 = scmp.eq.s32.totalorder %s34, 7
      %p214 = por %p212, %p213
      %p216 = scmp.ne.s32.totalorder %s199, %s215
      %p217 = scmp.eq.s32.totalorder %s34, 0
      %p218 = por %p216, %p217
      %s219 = ssub.s32 %s35, %s54
      %p220 = scmp.eq.s32.totalorder %s219, 0
      %s222 = sadd.s32 %s221, 1
      %s223 = scalar_select %p220, %s221, %s222
      %p226 = pneg %p220
      %p227 = scmp.eq.s32.totalorder %s28, 7
      %p228 = por %p226, %p227
      %p229 = scmp.ne.s32.totalorder %s221, %s224
      %p230 = scmp.eq.s32.totalorder %s28, 0
      %p231 = por %p229, %p230
      %p232 = scmp.ne.s32.totalorder %s221, %s224
      %p233 = scmp.eq.s32.totalorder %s33, 7
      %p234 = por %p232, %p233
      %p235 = scmp.ne.s32.totalorder %s224, %s225
      %p236 = scmp.eq.s32.totalorder %s33, 0
      %p237 = por %p235, %p236
      %p238 = scmp.ne.s32.totalorder %s224, %s225
      %p239 = scmp.eq.s32.totalorder %s34, 7
      %p240 = por %p238, %p239
      %p242 = scmp.ne.s32.totalorder %s225, %s241
      %p243 = scmp.eq.s32.totalorder %s34, 0
      %p244 = por %p242, %p243
      %s245 = ssub.s32 %s36, %s50
      %s246 = ssub.s32 %s35, %s54
      %s247 = sor.u32 %s245, %s246
      %s248 = ssub.s32 %s37, %s46
      %s249 = sor.u32 %s247, %s248
      %p250 = scmp.eq.s32.totalorder %s249, 0
      %s252 = sadd.s32 %s251, 1
      %s253 = scalar_select %p250, %s251, %s252
      %p256 = pneg %p250
      %p257 = scmp.eq.s32.totalorder %s28, 7
      %p258 = por %p256, %p257
      %p259 = scmp.ne.s32.totalorder %s251, %s254
      %p260 = scmp.eq.s32.totalorder %s28, 0
      %p261 = por %p259, %p260
      %p262 = scmp.ne.s32.totalorder %s251, %s254
      %p263 = scmp.eq.s32.totalorder %s33, 7
      %p264 = por %p262, %p263
      %p265 = scmp.ne.s32.totalorder %s254, %s255
      %p266 = scmp.eq.s32.totalorder %s33, 0
      %p267 = por %p265, %p266
      %p268 = scmp.ne.s32.totalorder %s254, %s255
      %p269 = scmp.eq.s32.totalorder %s34, 7
      %p270 = por %p268, %p269
      %p272 = scmp.ne.s32.totalorder %s255, %s271
      %p273 = scmp.eq.s32.totalorder %s34, 0
      %p274 = por %p272, %p273
      %p275 = scmp.le.s32.totalorder 1, %s28
      %p276 = scmp.lt.s32.totalorder %s28, 9
      %p277 = pnand %p275, %p276
      %p278 = pneg %p277
      // Predicated region
      $region9: #{tpu_custom_call.1} parent=5 // pred_check
        _
      $region10: #{tpu_custom_call.1} parent=5 // pred_check_branch
        %280 = sbr.rel (%p277) target = $region12
      $region11: #{tpu_custom_call.1} parent=5 // pred_region
        %s281 = ssub.s32 %s28, 1
      $region12: #{tpu_custom_call.1} parent=5 // pred_fallthru
        _
      %p282 = scmp.lt.s32.totalorder %s28, 8
      // Predicated region
      $region13: #{tpu_custom_call.1} parent=5 // pred_check
        %p283 = pneg %p282
      $region14: #{tpu_custom_call.1} parent=5 // pred_check_branch
        %285 = sbr.rel (%p283) target = $region16
      $region15: #{tpu_custom_call.1} parent=5 // pred_region
        // Predicated region
        $region17: #{tpu_custom_call.1} parent=15 // pred_check
          %p286 = pneg %p67
        $region18: #{tpu_custom_call.1} parent=15 // pred_check_branch
          %288 = sbr.rel (%p286) target = $region20
        $region19: #{tpu_custom_call.1} parent=15 // pred_region
          %s289 = sand.u32 %s57, 1
          %s290 = scalar_lea.sflag [#allocation3], %s289
          %s291 = sand.u32 %s57, 1
          %s292 = scalar_lea.vmem [#allocation2], %s291
          %294 = vsyncadd %s290, 0
          %s295 = scalar_lea.hbm %s0, %s36
          %s297 = sshll.u32 %s295, 4
          %s298 = int_to_ptr.hbm [resolvable:$true] %s297
          %s299 = sshll.u32 %s292, 4
          %s300 = int_to_ptr.vmem [resolvable:$true] %s299
          %302 = dma.hbm_to_vmem [thread:$0]  %s298, 16, %s300, %s290
        $region20: #{tpu_custom_call.1} parent=15 // pred_fallthru
          _
        // Predicated region
        $region21: #{tpu_custom_call.1} parent=15 // pred_check
          %p303 = pneg %p97
        $region22: #{tpu_custom_call.1} parent=15 // pred_check_branch
          %305 = sbr.rel (%p303) target = $region24
        $region23: #{tpu_custom_call.1} parent=15 // pred_region
          %s306 = sand.u32 %s28, 1
          %s307 = scalar_lea.sflag [#allocation6], %s306
          %s308 = sand.u32 %s87, 1
          %s309 = smul.addr %s308, 8
          %s310 = scalar_lea.vmem [#allocation5], %s309
          %312 = vsyncadd %s307, 0
          %s313 = sadd.s32 %s37, %s35
          %s314 = smul.addr %s36, 4
          %s315 = sadd.s32 %s313, %s314
          %s316 = smul.addr %s315, 8
          %s317 = scalar_lea.hbm %s1, %s316
          %s319 = sshll.u32 %s317, 4
          %s320 = int_to_ptr.hbm [resolvable:$true] %s319
          %s321 = sshll.u32 %s310, 4
          %s322 = int_to_ptr.vmem [resolvable:$true] %s321
          %324 = dma.hbm_to_vmem [thread:$0]  %s320, 128, %s322, %s307
        $region24: #{tpu_custom_call.1} parent=15 // pred_fallthru
          _
        // Predicated region
        $region25: #{tpu_custom_call.1} parent=15 // pred_check
          %p325 = pneg %p123
        $region26: #{tpu_custom_call.1} parent=15 // pred_check_branch
          %327 = sbr.rel (%p325) target = $region28
        $region27: #{tpu_custom_call.1} parent=15 // pred_region
          %s328 = sand.u32 %s28, 1
          %s329 = scalar_lea.sflag [#allocation6], %s328
          %s330 = sand.u32 %s113, 1
          %s331 = scalar_lea.vmem [#allocation7], %s330
          %333 = vsyncadd %s329, 0
          %s334 = scalar_lea.hbm %s2, %s35
          %s336 = sshll.u32 %s334, 4
          %s337 = int_to_ptr.hbm [resolvable:$true] %s336
          %s338 = sshll.u32 %s331, 4
          %s339 = int_to_ptr.vmem [resolvable:$true] %s338
          %341 = dma.hbm_to_vmem [thread:$0]  %s337, 16, %s339, %s329
        $region28: #{tpu_custom_call.1} parent=15 // pred_fallthru
          _
        // Predicated region
        $region29: #{tpu_custom_call.1} parent=15 // pred_check
          %p342 = pneg %p149
        $region30: #{tpu_custom_call.1} parent=15 // pred_check_branch
          %344 = sbr.rel (%p342) target = $region32
        $region31: #{tpu_custom_call.1} parent=15 // pred_region
          %s345 = sand.u32 %s28, 1
          %s346 = scalar_lea.sflag [#allocation9], %s345
          %s347 = sand.u32 %s139, 1
          %s348 = scalar_lea.vmem [#allocation8], %s347
          %350 = vsyncadd %s346, 0
          %s351 = scalar_lea.hbm %s3, %s35
          %s353 = sshll.u32 %s351, 4
          %s354 = int_to_ptr.hbm [resolvable:$true] %s353
          %s355 = sshll.u32 %s348, 4
          %s356 = int_to_ptr.vmem [resolvable:$true] %s355
          %358 = dma.hbm_to_vmem [thread:$0]  %s354, 16, %s356, %s346
        $region32: #{tpu_custom_call.1} parent=15 // pred_fallthru
          _
        // Predicated region
        $region33: #{tpu_custom_call.1} parent=15 // pred_check
          %p359 = pneg %p177
        $region34: #{tpu_custom_call.1} parent=15 // pred_check_branch
          %361 = sbr.rel (%p359) target = $region36
        $region35: #{tpu_custom_call.1} parent=15 // pred_region
          %s362 = sand.u32 %s28, 1
          %s363 = scalar_lea.sflag [#allocation9], %s362
          %s364 = sand.u32 %s167, 1
          %s365 = smul.addr %s364, 8
          %s366 = scalar_lea.vmem [#allocation10], %s365
          %368 = vsyncadd %s363, 0
          %s369 = smul.addr %s36, 4
          %s370 = sadd.s32 %s35, %s369
          %s371 = smul.addr %s370, 8
          %s372 = scalar_lea.hbm %s4, %s371
          %s374 = sshll.u32 %s372, 4
          %s375 = int_to_ptr.hbm [resolvable:$true] %s374
          %s376 = sshll.u32 %s366, 4
          %s377 = int_to_ptr.vmem [resolvable:$true] %s376
          %379 = dma.hbm_to_vmem [thread:$0]  %s375, 128, %s377, %s363
        $region36: #{tpu_custom_call.1} parent=15 // pred_fallthru
          _
        // Predicated region
        $region37: #{tpu_custom_call.1} parent=15 // pred_check
          %p380 = pneg %p205
        $region38: #{tpu_custom_call.1} parent=15 // pred_check_branch
          %382 = sbr.rel (%p380) target = $region40
        $region39: #{tpu_custom_call.1} parent=15 // pred_region
          %s383 = sand.u32 %s28, 1
          %s384 = scalar_lea.sflag [#allocation12], %s383
          %s385 = sand.u32 %s195, 1
          %s386 = smul.addr %s385, 8
          %s387 = scalar_lea.vmem [#allocation11], %s386
          %389 = vsyncadd %s384, 0
          %s390 = smul.addr %s36, 4
          %s391 = sadd.s32 %s35, %s390
          %s392 = smul.addr %s391, 8
          %s393 = scalar_lea.hbm %s5, %s392
          %s395 = sshll.u32 %s393, 4
          %s396 = int_to_ptr.hbm [resolvable:$true] %s395
          %s397 = sshll.u32 %s387, 4
          %s398 = int_to_ptr.vmem [resolvable:$true] %s397
          %400 = dma.hbm_to_vmem [thread:$0]  %s396, 128, %s398, %s384
        $region40: #{tpu_custom_call.1} parent=15 // pred_fallthru
          _
        // Predicated region
        $region41: #{tpu_custom_call.1} parent=15 // pred_check
          %p401 = pneg %p231
        $region42: #{tpu_custom_call.1} parent=15 // pred_check_branch
          %403 = sbr.rel (%p401) target = $region44
        $region43: #{tpu_custom_call.1} parent=15 // pred_region
          %s404 = sand.u32 %s28, 1
          %s405 = scalar_lea.sflag [#allocation12], %s404
          %s406 = sand.u32 %s221, 1
          %s407 = smul.addr %s406, 8
          %s408 = scalar_lea.vmem [#allocation13], %s407
          %410 = vsyncadd %s405, 0
          %s411 = smul.addr %s35, 8
          %s412 = scalar_lea.hbm %s6, %s411
          %s414 = sshll.u32 %s412, 4
          %s415 = int_to_ptr.hbm [resolvable:$true] %s414
          %s416 = sshll.u32 %s408, 4
          %s417 = int_to_ptr.vmem [resolvable:$true] %s416
          %419 = dma.hbm_to_vmem [thread:$0]  %s415, 128, %s417, %s405
        $region44: #{tpu_custom_call.1} parent=15 // pred_fallthru
          _
      $region16: #{tpu_custom_call.1} parent=5 // pred_fallthru
        _
      %p420 = scmp.le.s32.totalorder 1, %s28
      %p421 = scmp.lt.s32.totalorder %s28, 9
      %p422 = pnand %p420, %p421
      %p423 = pneg %p422
      // Predicated region
      $region45: #{tpu_custom_call.1} parent=5 // pred_check
        _
      $region46: #{tpu_custom_call.1} parent=5 // pred_check_branch
        %425 = sbr.rel (%p422) target = $region48
      $region47: #{tpu_custom_call.1} parent=5 // pred_region
        %s426 = ssub.s32 %s28, 1
        %s427 = sand.u32 %s60, 1
        %s428 = scalar_lea.sflag [#allocation3], %s427
        %s429 = sand.u32 %s60, 1
        %s430 = scalar_lea.vmem [#allocation2], %s429
        // Predicated region
        $region49: #{tpu_custom_call.1} parent=47 // pred_check
          %p431 = pneg %p73
        $region50: #{tpu_custom_call.1} parent=47 // pred_check_branch
          %433 = sbr.rel (%p431) target = $region52
        $region51: #{tpu_custom_call.1} parent=47 // pred_region
          %435 = dma.done %s428, 16
        $region52: #{tpu_custom_call.1} parent=47 // pred_fallthru
          _
        %s436 = sand.u32 %s33, 1
        %s437 = scalar_lea.sflag [#allocation6], %s436
        %s438 = sand.u32 %s90, 1
        %s439 = smul.addr %s438, 8
        %s440 = scalar_lea.vmem [#allocation5], %s439
        // Predicated region
        $region53: #{tpu_custom_call.1} parent=47 // pred_check
          %p441 = pneg %p103
        $region54: #{tpu_custom_call.1} parent=47 // pred_check_branch
          %443 = sbr.rel (%p441) target = $region56
        $region55: #{tpu_custom_call.1} parent=47 // pred_region
          %445 = dma.done %s437, 128
        $region56: #{tpu_custom_call.1} parent=47 // pred_fallthru
          _
        %s446 = sand.u32 %s33, 1
        %s447 = scalar_lea.sflag [#allocation6], %s446
        %s448 = sand.u32 %s116, 1
        %s449 = scalar_lea.vmem [#allocation7], %s448
        // Predicated region
        $region57: #{tpu_custom_call.1} parent=47 // pred_check
          %p450 = pneg %p129
        $region58: #{tpu_custom_call.1} parent=47 // pred_check_branch
          %452 = sbr.rel (%p450) target = $region60
        $region59: #{tpu_custom_call.1} parent=47 // pred_region
          %454 = dma.done %s447, 16
        $region60: #{tpu_custom_call.1} parent=47 // pred_fallthru
          _
        %s455 = sand.u32 %s33, 1
        %s456 = scalar_lea.sflag [#allocation9], %s455
        %s457 = sand.u32 %s142, 1
        %s458 = scalar_lea.vmem [#allocation8], %s457
        // Predicated region
        $region61: #{tpu_custom_call.1} parent=47 // pred_check
          %p459 = pneg %p155
        $region62: #{tpu_custom_call.1} parent=47 // pred_check_branch
          %461 = sbr.rel (%p459) target = $region64
        $region63: #{tpu_custom_call.1} parent=47 // pred_region
          %463 = dma.done %s456, 16
        $region64: #{tpu_custom_call.1} parent=47 // pred_fallthru
          _
        %s464 = sand.u32 %s33, 1
        %s465 = scalar_lea.sflag [#allocation9], %s464
        %s466 = sand.u32 %s170, 1
        %s467 = smul.addr %s466, 8
        %s468 = scalar_lea.vmem [#allocation10], %s467
        // Predicated region
        $region65: #{tpu_custom_call.1} parent=47 // pred_check
          %p469 = pneg %p183
        $region66: #{tpu_custom_call.1} parent=47 // pred_check_branch
          %471 = sbr.rel (%p469) target = $region68
        $region67: #{tpu_custom_call.1} parent=47 // pred_region
          %473 = dma.done %s465, 128
        $region68: #{tpu_custom_call.1} parent=47 // pred_fallthru
          _
        %s474 = sand.u32 %s33, 1
        %s475 = scalar_lea.sflag [#allocation12], %s474
        %s476 = sand.u32 %s198, 1
        %s477 = smul.addr %s476, 8
        %s478 = scalar_lea.vmem [#allocation11], %s477
        // Predicated region
        $region69: #{tpu_custom_call.1} parent=47 // pred_check
          %p479 = pneg %p211
        $region70: #{tpu_custom_call.1} parent=47 // pred_check_branch
          %481 = sbr.rel (%p479) target = $region72
        $region71: #{tpu_custom_call.1} parent=47 // pred_region
          %483 = dma.done %s475, 128
        $region72: #{tpu_custom_call.1} parent=47 // pred_fallthru
          _
        %s484 = sand.u32 %s33, 1
        %s485 = scalar_lea.sflag [#allocation12], %s484
        %s486 = sand.u32 %s224, 1
        %s487 = smul.addr %s486, 8
        %s488 = scalar_lea.vmem [#allocation13], %s487
        // Predicated region
        $region73: #{tpu_custom_call.1} parent=47 // pred_check
          %p489 = pneg %p237
        $region74: #{tpu_custom_call.1} parent=47 // pred_check_branch
          %491 = sbr.rel (%p489) target = $region76
        $region75: #{tpu_custom_call.1} parent=47 // pred_region
          %493 = dma.done %s485, 128
        $region76: #{tpu_custom_call.1} parent=47 // pred_fallthru
          _
        %s494 = sand.u32 %s60, 1
        %s495 = scalar_lea.sflag [#allocation3], %s494
        %s496 = sand.u32 %s60, 1
        %s497 = scalar_lea.vmem [#allocation2], %s496
        %p498 = pneg %p73
        %p499 = pneg %p70
        %s500 = sand.u32 %s33, 1
        %s501 = scalar_lea.sflag [#allocation6], %s500
        %s502 = sand.u32 %s90, 1
        %s503 = smul.addr %s502, 8
        %s504 = scalar_lea.vmem [#allocation5], %s503
        %p505 = pneg %p103
        %p506 = pneg %p100
        %s507 = sand.u32 %s33, 1
        %s508 = scalar_lea.sflag [#allocation6], %s507
        %s509 = sand.u32 %s116, 1
        %s510 = scalar_lea.vmem [#allocation7], %s509
        %p511 = pneg %p129
        %p512 = pneg %p126
        %s513 = sand.u32 %s33, 1
        %s514 = scalar_lea.sflag [#allocation9], %s513
        %s515 = sand.u32 %s142, 1
        %s516 = scalar_lea.vmem [#allocation8], %s515
        %p517 = pneg %p155
        %p518 = pneg %p152
        %s519 = sand.u32 %s33, 1
        %s520 = scalar_lea.sflag [#allocation9], %s519
        %s521 = sand.u32 %s170, 1
        %s522 = smul.addr %s521, 8
        %s523 = scalar_lea.vmem [#allocation10], %s522
        %p524 = pneg %p183
        %p525 = pneg %p180
        %s526 = sand.u32 %s33, 1
        %s527 = scalar_lea.sflag [#allocation12], %s526
        %s528 = sand.u32 %s198, 1
        %s529 = smul.addr %s528, 8
        %s530 = scalar_lea.vmem [#allocation11], %s529
        %p531 = pneg %p211
        %p532 = pneg %p208
        %s533 = sand.u32 %s33, 1
        %s534 = scalar_lea.sflag [#allocation12], %s533
        %s535 = sand.u32 %s224, 1
        %s536 = smul.addr %s535, 8
        %s537 = scalar_lea.vmem [#allocation13], %s536
        %p538 = pneg %p237
        %p539 = pneg %p234
        %p540 = pneg %p267
        %p541 = pneg %p264
        %s542 = sand.u32 %s254, 1
        %s543 = scalar_lea.sflag [#allocation4], %s542
        %s544 = sand.u32 %s254, 1
        %s545 = smul.addr %s544, 8
        %s546 = scalar_lea.vmem [#allocation14], %s545
        %v547 = vld [vmem:[%s440] sm:$0xff]
        %v548 = vld [vmem:[%s449] sm:$0x1]
        %v549 = vld [vmem:[%s458] sm:$0x1]
        %v550 = vld [vmem:[%s468] sm:$0xff]
        %v551 = vld [vmem:[%s478] sm:$0xff]
        %v552 = vld [vmem:[%s488] sm:$0xff]
        %v554 = vperm.slane %v548, 0
        %v556 = vadd.f32 %v547, %v554
        %v558 = vperm.slane %v549, 0
        %v560 = vadd.f32 %v547, %v558
        %vm561 = vcmask 64512
        %v563 = vsel %vm561, %v560, 0
        %565 = vmatpush.msra.mxu0 0.0
        %566 = vmatpush.msra.mxu0 0.0
        %567 = vmatpush.msra.mxu0 0.0
        %568 = vmatpush.msra.mxu0 0.0
        %569 = vmatpush.msra.mxu0 0.0
        %570 = vmatpush.msra.mxu0 0.0
        %571 = vmatpush.msra.mxu0 0.0
        %572 = vmatpush.msra.mxu0 0.0
        %573 = vmatpush.msra.mxu0 0.0
        %574 = vmatpush.msra.mxu0 0.0
        %575 = vmatpush.msra.mxu0 0.0
        %576 = vmatpush.msra.mxu0 0.0
        %577 = vmatpush.msra.mxu0 0.0
        %578 = vmatpush.msra.mxu0 0.0
        %579 = vmatpush.msra.mxu0 0.0
        %v580 = vand.u32 %v552, 4294901760
        %581 = vmatpush.msra.mxu0 %v580
        %v582 = vand.u32 %v563, 4294901760
        %v583 = vsub.f32 %v563, %v582
        %v584 = vand.u32 %v583, 4294901760
        %v585 = vsub.f32 %v583, %v584
        %v586 = vand.u32 %v585, 4294901760
        %587 = vmatmul.f32.gmra.mxu0 %v586
        %v588 = vpop.f32.mrf.mxu0
        %v589 = vadd.f32 0.0, %v588
        %590 = vdwg.mxu0
        %591 = vmatpush.msra.mxu0 0.0
        %592 = vmatpush.msra.mxu0 0.0
        %593 = vmatpush.msra.mxu0 0.0
        %594 = vmatpush.msra.mxu0 0.0
        %595 = vmatpush.msra.mxu0 0.0
        %596 = vmatpush.msra.mxu0 0.0
        %597 = vmatpush.msra.mxu0 0.0
        %598 = vmatpush.msra.mxu0 0.0
        %599 = vmatpush.msra.mxu0 0.0
        %600 = vmatpush.msra.mxu0 0.0
        %601 = vmatpush.msra.mxu0 0.0
        %602 = vmatpush.msra.mxu0 0.0
        %603 = vmatpush.msra.mxu0 0.0
        %604 = vmatpush.msra.mxu0 0.0
        %605 = vmatpush.msra.mxu0 0.0
        %v606 = vand.u32 %v552, 4294901760
        %v607 = vsub.f32 %v552, %v606
        %v608 = vand.u32 %v607, 4294901760
        %v609 = vsub.f32 %v607, %v608
        %v610 = vand.u32 %v609, 4294901760
        %611 = vmatpush.msra.mxu0 %v610
        %v612 = vand.u32 %v563, 4294901760
        %613 = vmatmul.f32.gmra.mxu0 %v612
        %v614 = vpop.f32.mrf.mxu0
        %v615 = vadd.f32 %v589, %v614
        %616 = vdwg.mxu0
        %617 = vmatpush.msra.mxu0 0.0
        %618 = vmatpush.msra.mxu0 0.0
        %619 = vmatpush.msra.mxu0 0.0
        %620 = vmatpush.msra.mxu0 0.0
        %621 = vmatpush.msra.mxu0 0.0
        %622 = vmatpush.msra.mxu0 0.0
        %623 = vmatpush.msra.mxu0 0.0
        %624 = vmatpush.msra.mxu0 0.0
        %625 = vmatpush.msra.mxu0 0.0
        %626 = vmatpush.msra.mxu0 0.0
        %627 = vmatpush.msra.mxu0 0.0
        %628 = vmatpush.msra.mxu0 0.0
        %629 = vmatpush.msra.mxu0 0.0
        %630 = vmatpush.msra.mxu0 0.0
        %631 = vmatpush.msra.mxu0 0.0
        %v632 = vand.u32 %v552, 4294901760
        %v633 = vsub.f32 %v552, %v632
        %634 = vmatpush.msra.mxu0 %v633
        %v635 = vand.u32 %v563, 4294901760
        %v636 = vsub.f32 %v563, %v635
        %637 = vmatmul.f32.gmra.mxu0 %v636
        %v638 = vpop.f32.mrf.mxu0
        %v639 = vadd.f32 %v615, %v638
        %640 = vdwg.mxu0
        %641 = vmatpush.msra.mxu0 0.0
        %642 = vmatpush.msra.mxu0 0.0
        %643 = vmatpush.msra.mxu0 0.0
        %644 = vmatpush.msra.mxu0 0.0
        %645 = vmatpush.msra.mxu0 0.0
        %646 = vmatpush.msra.mxu0 0.0
        %647 = vmatpush.msra.mxu0 0.0
        %648 = vmatpush.msra.mxu0 0.0
        %649 = vmatpush.msra.mxu0 0.0
        %650 = vmatpush.msra.mxu0 0.0
        %651 = vmatpush.msra.mxu0 0.0
        %652 = vmatpush.msra.mxu0 0.0
        %653 = vmatpush.msra.mxu0 0.0
        %654 = vmatpush.msra.mxu0 0.0
        %655 = vmatpush.msra.mxu0 0.0
        %v656 = vand.u32 %v552, 4294901760
        %657 = vmatpush.msra.mxu0 %v656
        %v658 = vand.u32 %v563, 4294901760
        %v659 = vsub.f32 %v563, %v658
        %v660 = vand.u32 %v659, 4294901760
        %661 = vmatmul.f32.gmra.mxu0 %v660
        %v662 = vpop.f32.mrf.mxu0
        %v663 = vadd.f32 %v639, %v662
        %664 = vdwg.mxu0
        %665 = vmatpush.msra.mxu0 0.0
        %666 = vmatpush.msra.mxu0 0.0
        %667 = vmatpush.msra.mxu0 0.0
        %668 = vmatpush.msra.mxu0 0.0
        %669 = vmatpush.msra.mxu0 0.0
        %670 = vmatpush.msra.mxu0 0.0
        %671 = vmatpush.msra.mxu0 0.0
        %672 = vmatpush.msra.mxu0 0.0
        %673 = vmatpush.msra.mxu0 0.0
        %674 = vmatpush.msra.mxu0 0.0
        %675 = vmatpush.msra.mxu0 0.0
        %676 = vmatpush.msra.mxu0 0.0
        %677 = vmatpush.msra.mxu0 0.0
        %678 = vmatpush.msra.mxu0 0.0
        %679 = vmatpush.msra.mxu0 0.0
        %v680 = vand.u32 %v552, 4294901760
        %v681 = vsub.f32 %v552, %v680
        %v682 = vand.u32 %v681, 4294901760
        %683 = vmatpush.msra.mxu0 %v682
        %v684 = vand.u32 %v563, 4294901760
        %685 = vmatmul.f32.gmra.mxu0 %v684
        %v686 = vpop.f32.mrf.mxu0
        %v687 = vadd.f32 %v663, %v686
        %688 = vdwg.mxu0
        %689 = vmatpush.msra.mxu0 0.0
        %690 = vmatpush.msra.mxu0 0.0
        %691 = vmatpush.msra.mxu0 0.0
        %692 = vmatpush.msra.mxu0 0.0
        %693 = vmatpush.msra.mxu0 0.0
        %694 = vmatpush.msra.mxu0 0.0
        %695 = vmatpush.msra.mxu0 0.0
        %696 = vmatpush.msra.mxu0 0.0
        %697 = vmatpush.msra.mxu0 0.0
        %698 = vmatpush.msra.mxu0 0.0
        %699 = vmatpush.msra.mxu0 0.0
        %700 = vmatpush.msra.mxu0 0.0
        %701 = vmatpush.msra.mxu0 0.0
        %702 = vmatpush.msra.mxu0 0.0
        %703 = vmatpush.msra.mxu0 0.0
        %v704 = vand.u32 %v552, 4294901760
        %705 = vmatpush.msra.mxu0 %v704
        %v706 = vand.u32 %v563, 4294901760
        %707 = vmatmul.f32.gmra.mxu0 %v706
        %v708 = vpop.f32.mrf.mxu0
        %v709 = vadd.f32 %v687, %v708
        %710 = vdwg.mxu0
        %712 = vrot.lane.b32.xlu0 %v709, 256
        %v713 = vpop.permute.xlu0 %712
        %v715 = vsel %vm561, %v556, 0
        %717 = vmatpush.msra.mxu0 0.0
        %718 = vmatpush.msra.mxu0 0.0
        %719 = vmatpush.msra.mxu0 0.0
        %720 = vmatpush.msra.mxu0 0.0
        %721 = vmatpush.msra.mxu0 0.0
        %722 = vmatpush.msra.mxu0 0.0
        %723 = vmatpush.msra.mxu0 0.0
        %724 = vmatpush.msra.mxu0 0.0
        %725 = vmatpush.msra.mxu0 0.0
        %726 = vmatpush.msra.mxu0 0.0
        %727 = vmatpush.msra.mxu0 0.0
        %728 = vmatpush.msra.mxu0 0.0
        %729 = vmatpush.msra.mxu0 0.0
        %730 = vmatpush.msra.mxu0 0.0
        %731 = vmatpush.msra.mxu0 0.0
        %v732 = vand.u32 %v550, 4294901760
        %733 = vmatpush.msra.mxu0 %v732
        %v734 = vand.u32 %v715, 4294901760
        %v735 = vsub.f32 %v715, %v734
        %v736 = vand.u32 %v735, 4294901760
        %v737 = vsub.f32 %v735, %v736
        %v738 = vand.u32 %v737, 4294901760
        %739 = vmatmul.f32.gmra.mxu0 %v738
        %v740 = vpop.f32.mrf.mxu0
        %v741 = vadd.f32 %v713, %v740
        %742 = vdwg.mxu0
        %743 = vmatpush.msra.mxu0 0.0
        %744 = vmatpush.msra.mxu0 0.0
        %745 = vmatpush.msra.mxu0 0.0
        %746 = vmatpush.msra.mxu0 0.0
        %747 = vmatpush.msra.mxu0 0.0
        %748 = vmatpush.msra.mxu0 0.0
        %749 = vmatpush.msra.mxu0 0.0
        %750 = vmatpush.msra.mxu0 0.0
        %751 = vmatpush.msra.mxu0 0.0
        %752 = vmatpush.msra.mxu0 0.0
        %753 = vmatpush.msra.mxu0 0.0
        %754 = vmatpush.msra.mxu0 0.0
        %755 = vmatpush.msra.mxu0 0.0
        %756 = vmatpush.msra.mxu0 0.0
        %757 = vmatpush.msra.mxu0 0.0
        %v758 = vand.u32 %v550, 4294901760
        %v759 = vsub.f32 %v550, %v758
        %v760 = vand.u32 %v759, 4294901760
        %v761 = vsub.f32 %v759, %v760
        %v762 = vand.u32 %v761, 4294901760
        %763 = vmatpush.msra.mxu0 %v762
        %v764 = vand.u32 %v715, 4294901760
        %765 = vmatmul.f32.gmra.mxu0 %v764
        %v766 = vpop.f32.mrf.mxu0
        %v767 = vadd.f32 %v741, %v766
        %768 = vdwg.mxu0
        %769 = vmatpush.msra.mxu0 0.0
        %770 = vmatpush.msra.mxu0 0.0
        %771 = vmatpush.msra.mxu0 0.0
        %772 = vmatpush.msra.mxu0 0.0
        %773 = vmatpush.msra.mxu0 0.0
        %774 = vmatpush.msra.mxu0 0.0
        %775 = vmatpush.msra.mxu0 0.0
        %776 = vmatpush.msra.mxu0 0.0
        %777 = vmatpush.msra.mxu0 0.0
        %778 = vmatpush.msra.mxu0 0.0
        %779 = vmatpush.msra.mxu0 0.0
        %780 = vmatpush.msra.mxu0 0.0
        %781 = vmatpush.msra.mxu0 0.0
        %782 = vmatpush.msra.mxu0 0.0
        %783 = vmatpush.msra.mxu0 0.0
        %v784 = vand.u32 %v550, 4294901760
        %v785 = vsub.f32 %v550, %v784
        %786 = vmatpush.msra.mxu0 %v785
        %v787 = vand.u32 %v715, 4294901760
        %v788 = vsub.f32 %v715, %v787
        %789 = vmatmul.f32.gmra.mxu0 %v788
        %v790 = vpop.f32.mrf.mxu0
        %v791 = vadd.f32 %v767, %v790
        %792 = vdwg.mxu0
        %793 = vmatpush.msra.mxu0 0.0
        %794 = vmatpush.msra.mxu0 0.0
        %795 = vmatpush.msra.mxu0 0.0
        %796 = vmatpush.msra.mxu0 0.0
        %797 = vmatpush.msra.mxu0 0.0
        %798 = vmatpush.msra.mxu0 0.0
        %799 = vmatpush.msra.mxu0 0.0
        %800 = vmatpush.msra.mxu0 0.0
        %801 = vmatpush.msra.mxu0 0.0
        %802 = vmatpush.msra.mxu0 0.0
        %803 = vmatpush.msra.mxu0 0.0
        %804 = vmatpush.msra.mxu0 0.0
        %805 = vmatpush.msra.mxu0 0.0
        %806 = vmatpush.msra.mxu0 0.0
        %807 = vmatpush.msra.mxu0 0.0
        %v808 = vand.u32 %v550, 4294901760
        %809 = vmatpush.msra.mxu0 %v808
        %v810 = vand.u32 %v715, 4294901760
        %v811 = vsub.f32 %v715, %v810
        %v812 = vand.u32 %v811, 4294901760
        %813 = vmatmul.f32.gmra.mxu0 %v812
        %v814 = vpop.f32.mrf.mxu0
        %v815 = vadd.f32 %v791, %v814
        %816 = vdwg.mxu0
        %817 = vmatpush.msra.mxu0 0.0
        %818 = vmatpush.msra.mxu0 0.0
        %819 = vmatpush.msra.mxu0 0.0
        %820 = vmatpush.msra.mxu0 0.0
        %821 = vmatpush.msra.mxu0 0.0
        %822 = vmatpush.msra.mxu0 0.0
        %823 = vmatpush.msra.mxu0 0.0
        %824 = vmatpush.msra.mxu0 0.0
        %825 = vmatpush.msra.mxu0 0.0
        %826 = vmatpush.msra.mxu0 0.0
        %827 = vmatpush.msra.mxu0 0.0
        %828 = vmatpush.msra.mxu0 0.0
        %829 = vmatpush.msra.mxu0 0.0
        %830 = vmatpush.msra.mxu0 0.0
        %831 = vmatpush.msra.mxu0 0.0
        %v832 = vand.u32 %v550, 4294901760
        %v833 = vsub.f32 %v550, %v832
        %v834 = vand.u32 %v833, 4294901760
        %835 = vmatpush.msra.mxu0 %v834
        %v836 = vand.u32 %v715, 4294901760
        %837 = vmatmul.f32.gmra.mxu0 %v836
        %v838 = vpop.f32.mrf.mxu0
        %v839 = vadd.f32 %v815, %v838
        %840 = vdwg.mxu0
        %841 = vmatpush.msra.mxu0 0.0
        %842 = vmatpush.msra.mxu0 0.0
        %843 = vmatpush.msra.mxu0 0.0
        %844 = vmatpush.msra.mxu0 0.0
        %845 = vmatpush.msra.mxu0 0.0
        %846 = vmatpush.msra.mxu0 0.0
        %847 = vmatpush.msra.mxu0 0.0
        %848 = vmatpush.msra.mxu0 0.0
        %849 = vmatpush.msra.mxu0 0.0
        %850 = vmatpush.msra.mxu0 0.0
        %851 = vmatpush.msra.mxu0 0.0
        %852 = vmatpush.msra.mxu0 0.0
        %853 = vmatpush.msra.mxu0 0.0
        %854 = vmatpush.msra.mxu0 0.0
        %855 = vmatpush.msra.mxu0 0.0
        %v856 = vand.u32 %v550, 4294901760
        %857 = vmatpush.msra.mxu0 %v856
        %v858 = vand.u32 %v715, 4294901760
        %859 = vmatmul.f32.gmra.mxu0 %v858
        %v860 = vpop.f32.mrf.mxu0
        %v861 = vadd.f32 %v839, %v860
        %862 = vdwg.mxu0
        %v863 = vld [vmem:[%s430] sm:$0x1]
        %v865 = vperm.slane %v863, 0
        %v867 = vadd.f32 %v861, %v865
        %v868 = vsel %vm561, %v867, -inf
        %869 = vmax.xlane.f32.xlu0 %v868
        %v870 = vpop.xlane.xlu0 %869
        %v871 = vsub.f32 %v867, %v870
        %v872 = vmul.f32 %v871, 1.442695
        %v873 = vpow.pop %v872
        %v874 = vsel %vm561, %v873, 0.0
        %875 = vadd.xlane.f32.xlu0 %v874
        %v876 = vpop.xlane.xlu0 %875
        %v877 = vrcp.pop %v876
        %v878 = vmul.f32 %v876, %v877
        %v879 = vsub.f32 1.0, %v878
        %v880 = vmul.f32 %v877, %v879
        %v881 = vadd.f32 %v877, %v880
        %vm882 = vweird.f32 %v876
        %vm883 = vweird.f32 %v877
        %vm884 = vmor %vm882, %vm883
        %v885 = vsel %vm884, %v877, %v881
        %v886 = vand.u32 2147483647, %v876
        %vm887 = vcmp.eq.f32.partialorder %v886, 8.507059e+37
        %v888 = vand.u32 %v876, 2147483648
        %v889 = vor.u32 1.1754944e-38, %v888
        %v890 = vsel %vm887, %v889, %v885
        %v891 = vmul.f32 %v873, %v890
        %v893 = vsel %vm561, %v551, 0
        %v896 = vsel %vm561, %v891, 0
        %898 = vmatpush.xpose.msra.mxu0 0.0
        %899 = vmatpush.xpose.msra.mxu0 0.0
        %900 = vmatpush.xpose.msra.mxu0 0.0
        %901 = vmatpush.xpose.msra.mxu0 0.0
        %902 = vmatpush.xpose.msra.mxu0 0.0
        %903 = vmatpush.xpose.msra.mxu0 0.0
        %904 = vmatpush.xpose.msra.mxu0 0.0
        %905 = vmatpush.xpose.msra.mxu0 0.0
        %906 = vmatpush.xpose.msra.mxu0 0.0
        %907 = vmatpush.xpose.msra.mxu0 0.0
        %908 = vmatpush.xpose.msra.mxu0 0.0
        %909 = vmatpush.xpose.msra.mxu0 0.0
        %910 = vmatpush.xpose.msra.mxu0 0.0
        %911 = vmatpush.xpose.msra.mxu0 0.0
        %912 = vmatpush.xpose.msra.mxu0 0.0
        %v913 = vand.u32 %v896, 4294901760
        %914 = vmatpush.xpose.msra.mxu0 %v913
        %v915 = vand.u32 %v893, 4294901760
        %v916 = vsub.f32 %v893, %v915
        %v917 = vand.u32 %v916, 4294901760
        %v918 = vsub.f32 %v916, %v917
        %v919 = vand.u32 %v918, 4294901760
        %920 = vmatmul.f32.gmra.mxu0 %v919
        %v921 = vpop.f32.mrf.mxu0
        %v922 = vadd.f32 0.0, %v921
        %923 = vdwg.mxu0
        %924 = vmatpush.xpose.msra.mxu0 0.0
        %925 = vmatpush.xpose.msra.mxu0 0.0
        %926 = vmatpush.xpose.msra.mxu0 0.0
        %927 = vmatpush.xpose.msra.mxu0 0.0
        %928 = vmatpush.xpose.msra.mxu0 0.0
        %929 = vmatpush.xpose.msra.mxu0 0.0
        %930 = vmatpush.xpose.msra.mxu0 0.0
        %931 = vmatpush.xpose.msra.mxu0 0.0
        %932 = vmatpush.xpose.msra.mxu0 0.0
        %933 = vmatpush.xpose.msra.mxu0 0.0
        %934 = vmatpush.xpose.msra.mxu0 0.0
        %935 = vmatpush.xpose.msra.mxu0 0.0
        %936 = vmatpush.xpose.msra.mxu0 0.0
        %937 = vmatpush.xpose.msra.mxu0 0.0
        %938 = vmatpush.xpose.msra.mxu0 0.0
        %v939 = vand.u32 %v896, 4294901760
        %v940 = vsub.f32 %v896, %v939
        %v941 = vand.u32 %v940, 4294901760
        %v942 = vsub.f32 %v940, %v941
        %v943 = vand.u32 %v942, 4294901760
        %944 = vmatpush.xpose.msra.mxu0 %v943
        %v945 = vand.u32 %v893, 4294901760
        %946 = vmatmul.f32.gmra.mxu0 %v945
        %v947 = vpop.f32.mrf.mxu0
        %v948 = vadd.f32 %v922, %v947
        %949 = vdwg.mxu0
        %950 = vmatpush.xpose.msra.mxu0 0.0
        %951 = vmatpush.xpose.msra.mxu0 0.0
        %952 = vmatpush.xpose.msra.mxu0 0.0
        %953 = vmatpush.xpose.msra.mxu0 0.0
        %954 = vmatpush.xpose.msra.mxu0 0.0
        %955 = vmatpush.xpose.msra.mxu0 0.0
        %956 = vmatpush.xpose.msra.mxu0 0.0
        %957 = vmatpush.xpose.msra.mxu0 0.0
        %958 = vmatpush.xpose.msra.mxu0 0.0
        %959 = vmatpush.xpose.msra.mxu0 0.0
        %960 = vmatpush.xpose.msra.mxu0 0.0
        %961 = vmatpush.xpose.msra.mxu0 0.0
        %962 = vmatpush.xpose.msra.mxu0 0.0
        %963 = vmatpush.xpose.msra.mxu0 0.0
        %964 = vmatpush.xpose.msra.mxu0 0.0
        %v965 = vand.u32 %v896, 4294901760
        %v966 = vsub.f32 %v896, %v965
        %967 = vmatpush.xpose.msra.mxu0 %v966
        %v968 = vand.u32 %v893, 4294901760
        %v969 = vsub.f32 %v893, %v968
        %970 = vmatmul.f32.gmra.mxu0 %v969
        %v971 = vpop.f32.mrf.mxu0
        %v972 = vadd.f32 %v948, %v971
        %973 = vdwg.mxu0
        %974 = vmatpush.xpose.msra.mxu0 0.0
        %975 = vmatpush.xpose.msra.mxu0 0.0
        %976 = vmatpush.xpose.msra.mxu0 0.0
        %977 = vmatpush.xpose.msra.mxu0 0.0
        %978 = vmatpush.xpose.msra.mxu0 0.0
        %979 = vmatpush.xpose.msra.mxu0 0.0
        %980 = vmatpush.xpose.msra.mxu0 0.0
        %981 = vmatpush.xpose.msra.mxu0 0.0
        %982 = vmatpush.xpose.msra.mxu0 0.0
        %983 = vmatpush.xpose.msra.mxu0 0.0
        %984 = vmatpush.xpose.msra.mxu0 0.0
        %985 = vmatpush.xpose.msra.mxu0 0.0
        %986 = vmatpush.xpose.msra.mxu0 0.0
        %987 = vmatpush.xpose.msra.mxu0 0.0
        %988 = vmatpush.xpose.msra.mxu0 0.0
        %v989 = vand.u32 %v896, 4294901760
        %990 = vmatpush.xpose.msra.mxu0 %v989
        %v991 = vand.u32 %v893, 4294901760
        %v992 = vsub.f32 %v893, %v991
        %v993 = vand.u32 %v992, 4294901760
        %994 = vmatmul.f32.gmra.mxu0 %v993
        %v995 = vpop.f32.mrf.mxu0
        %v996 = vadd.f32 %v972, %v995
        %997 = vdwg.mxu0
        %998 = vmatpush.xpose.msra.mxu0 0.0
        %999 = vmatpush.xpose.msra.mxu0 0.0
        %1000 = vmatpush.xpose.msra.mxu0 0.0
        %1001 = vmatpush.xpose.msra.mxu0 0.0
        %1002 = vmatpush.xpose.msra.mxu0 0.0
        %1003 = vmatpush.xpose.msra.mxu0 0.0
        %1004 = vmatpush.xpose.msra.mxu0 0.0
        %1005 = vmatpush.xpose.msra.mxu0 0.0
        %1006 = vmatpush.xpose.msra.mxu0 0.0
        %1007 = vmatpush.xpose.msra.mxu0 0.0
        %1008 = vmatpush.xpose.msra.mxu0 0.0
        %1009 = vmatpush.xpose.msra.mxu0 0.0
        %1010 = vmatpush.xpose.msra.mxu0 0.0
        %1011 = vmatpush.xpose.msra.mxu0 0.0
        %1012 = vmatpush.xpose.msra.mxu0 0.0
        %v1013 = vand.u32 %v896, 4294901760
        %v1014 = vsub.f32 %v896, %v1013
        %v1015 = vand.u32 %v1014, 4294901760
        %1016 = vmatpush.xpose.msra.mxu0 %v1015
        %v1017 = vand.u32 %v893, 4294901760
        %1018 = vmatmul.f32.gmra.mxu0 %v1017
        %v1019 = vpop.f32.mrf.mxu0
        %v1020 = vadd.f32 %v996, %v1019
        %1021 = vdwg.mxu0
        %1022 = vmatpush.xpose.msra.mxu0 0.0
        %1023 = vmatpush.xpose.msra.mxu0 0.0
        %1024 = vmatpush.xpose.msra.mxu0 0.0
        %1025 = vmatpush.xpose.msra.mxu0 0.0
        %1026 = vmatpush.xpose.msra.mxu0 0.0
        %1027 = vmatpush.xpose.msra.mxu0 0.0
        %1028 = vmatpush.xpose.msra.mxu0 0.0
        %1029 = vmatpush.xpose.msra.mxu0 0.0
        %1030 = vmatpush.xpose.msra.mxu0 0.0
        %1031 = vmatpush.xpose.msra.mxu0 0.0
        %1032 = vmatpush.xpose.msra.mxu0 0.0
        %1033 = vmatpush.xpose.msra.mxu0 0.0
        %1034 = vmatpush.xpose.msra.mxu0 0.0
        %1035 = vmatpush.xpose.msra.mxu0 0.0
        %1036 = vmatpush.xpose.msra.mxu0 0.0
        %v1037 = vand.u32 %v896, 4294901760
        %1038 = vmatpush.xpose.msra.mxu0 %v1037
        %v1039 = vand.u32 %v893, 4294901760
        %1040 = vmatmul.f32.gmra.mxu0 %v1039
        %v1041 = vpop.f32.mrf.mxu0
        %v1042 = vadd.f32 %v1020, %v1041
        %1043 = vdwg.mxu0
        %1044 = vst.msk [vmem:[%s546] sm:$0xff] %vm561, %v1042
        %s1045 = sand.u32 %s254, 1
        %s1046 = scalar_lea.sflag [#allocation4], %s1045
        %s1047 = sand.u32 %s254, 1
        %s1048 = smul.addr %s1047, 8
        %s1049 = scalar_lea.vmem [#allocation14], %s1048
        // Predicated region
        $region77: #{tpu_custom_call.1} parent=47 // pred_check
          %p1050 = pneg %p264
        $region78: #{tpu_custom_call.1} parent=47 // pred_check_branch
          %1052 = sbr.rel (%p1050) target = $region80
        $region79: #{tpu_custom_call.1} parent=47 // pred_region
          %1054 = vsyncadd %s1046, 0
          %s1055 = sadd.s32 %s40, %s38
          %s1056 = smul.addr %s39, 4
          %s1057 = sadd.s32 %s1055, %s1056
          %s1058 = smul.addr %s1057, 8
          %s1059 = scalar_lea.hbm %s7, %s1058
          %s1061 = sshll.u32 %s1049, 4
          %s1062 = int_to_ptr.vmem [resolvable:$true] %s1061
          %s1063 = sshll.u32 %s1059, 4
          %s1064 = int_to_ptr.hbm [resolvable:$true] %s1063
          %1066 = dma.vmem_to_hbm [thread:$0]  %s1062, 128, %s1064, %s1046
        $region80: #{tpu_custom_call.1} parent=47 // pred_fallthru
          _
      $region48: #{tpu_custom_call.1} parent=5 // pred_fallthru
        _
      %p1067 = scmp.le.s32.totalorder 2, %s28
      // Predicated region
      $region81: #{tpu_custom_call.1} parent=5 // pred_check
        %p1068 = pneg %p1067
      $region82: #{tpu_custom_call.1} parent=5 // pred_check_branch
        %1070 = sbr.rel (%p1068) target = $region84
      $region83: #{tpu_custom_call.1} parent=5 // pred_region
        %s1071 = ssub.s32 %s28, 2
        // Predicated region
        $region85: #{tpu_custom_call.1} parent=83 // pred_check
          %p1072 = pneg %p270
        $region86: #{tpu_custom_call.1} parent=83 // pred_check_branch
          %1074 = sbr.rel (%p1072) target = $region88
        $region87: #{tpu_custom_call.1} parent=83 // pred_region
          %s1075 = sand.u32 %s255, 1
          %s1076 = scalar_lea.sflag [#allocation4], %s1075
          %s1077 = sand.u32 %s255, 1
          %s1078 = smul.addr %s1077, 8
          %s1079 = scalar_lea.vmem [#allocation14], %s1078
          %1081 = dma.done %s1076, 128
        $region88: #{tpu_custom_call.1} parent=83 // pred_fallthru
          _
      $region84: #{tpu_custom_call.1} parent=5 // pred_fallthru
        _
    $region6: #{tpu_custom_call.1} parent=1 // loop_footer
      %s32 = sadd.s32 1, %s28
    $region7: #{tpu_custom_call.1} parent=1 // loop_footer_branch
      %27 = sbr.rel target = $region3
    $region8: #{tpu_custom_call.1} parent=1 // loop_exit
      _
    %1082 = vsyncpa [#allocation3], 1
    %s1083 = scalar_lea.sflag [#allocation3], 1
    %1084 = vsyncpa %s1083, 1
    %1085 = vsyncpa [#allocation6], 1
    %s1086 = scalar_lea.sflag [#allocation6], 1
    %1087 = vsyncpa %s1086, 1
    %1088 = vsyncpa [#allocation9], 1
    %s1089 = scalar_lea.sflag [#allocation9], 1
    %1090 = vsyncpa %s1089, 1
    %1091 = vsyncpa [#allocation12], 1
    %s1092 = scalar_lea.sflag [#allocation12], 1
    %1093 = vsyncpa %s1092, 1
    %1094 = vsyncpa [#allocation4], 1
    %s1095 = scalar_lea.sflag [#allocation4], 1
    %1096 = vsyncpa %s1095, 1

</llo_original>
